<compile_context>
chip_gen: v7x
topology: tpu7x:2x2x1
jax: 0.10.0
libtpu: 0.0.40
codegen_flags: <defaults>
</compile_context>

<pallas_src>
import functools

import jax
import jax.numpy as jnp
from jax.experimental import pallas as pl

BN_EPS = 1e-5
LANE = 128
HID1, HID2 = 256, 128

# Packed per-feature parameter layout (all segment starts are 128-aligned).
OFF_G0 = 0
OFF_BE0 = OFF_G0 + LANE
OFF_G1 = OFF_BE0 + LANE
OFF_BE1 = OFF_G1 + HID1
OFF_G2 = OFF_BE1 + HID1
OFF_BE2 = OFF_G2 + HID2
OFF_B3 = OFF_BE2 + HID2
PACK_W = OFF_B3 + LANE  # = 1152


def _bn_train(x, gamma, beta, n_inv):
    """Training-mode BatchNorm1d (biased batch variance), single-pass stats,
    folded into one scale/shift FMA."""
    s1 = jnp.sum(x, axis=0, keepdims=True)
    s2 = jnp.sum(x * x, axis=0, keepdims=True)
    mean = s1 * n_inv
    var = jnp.maximum(s2 * n_inv - mean * mean, 0.0)
    scale = gamma * jax.lax.rsqrt(var + BN_EPS)   # rsqrt -> EUP (free slot)
    shift = beta - mean * scale
    return x * scale + shift


def pinetwork_kernel(obs_ref, pp_ref, w1_ref, w2_ref, w3_ref, out_ref, *, obs_dim):
    n_inv = 1.0 / float(obs_ref.shape[0])

    # Static, 128-aligned slices of the packed per-feature parameter vector.
    g0 = pp_ref[:, OFF_G0:OFF_G0 + obs_dim]
    be0 = pp_ref[:, OFF_BE0:OFF_BE0 + obs_dim]
    g1 = pp_ref[:, OFF_G1:OFF_G1 + HID1]
    be1 = pp_ref[:, OFF_BE1:OFF_BE1 + HID1]
    g2 = pp_ref[:, OFF_G2:OFF_G2 + HID2]
    be2 = pp_ref[:, OFF_BE2:OFF_BE2 + HID2]
    b3 = pp_ref[:, OFF_B3:OFF_B3 + LANE]

    # bn0
    x = _bn_train(obs_ref[...].astype(jnp.float32), g0, be0, n_inv)

    # fc1 -> bn1 -> relu   (fc1 bias omitted: cancelled by BN mean subtraction)
    h1 = jnp.dot(x.astype(jnp.bfloat16), w1_ref[...],
                 preferred_element_type=jnp.float32)
    h1 = jnp.maximum(_bn_train(h1, g1, be1, n_inv), 0.0)

    # fc2 -> bn2 -> relu   (fc2 bias omitted: cancelled by BN mean subtraction)
    h2 = jnp.dot(h1.astype(jnp.bfloat16), w2_ref[...],
                 preferred_element_type=jnp.float32)
    h2 = jnp.maximum(_bn_train(h2, g2, be2, n_inv), 0.0)

    # fc3 -> tanh ; lane-dense (batch, 128) store, real actions in [:, :act_dim]
    h3 = jnp.dot(h2.astype(jnp.bfloat16), w3_ref[...],
                 preferred_element_type=jnp.float32) + b3
    out_ref[...] = jnp.tanh(h3).astype(out_ref.dtype)


def pack_params(params, obs_dim, act_dim):
    """One-time repack: per-feature params -> one (1, PACK_W) f32 array,
    weights -> bf16 (w3 zero-padded to a lane-dense (128, 128))."""
    assert obs_dim <= LANE and act_dim <= LANE

    def seg(v, width):
        v = jnp.asarray(v, jnp.float32).reshape(1, -1)
        return jnp.pad(v, ((0, 0), (0, width - v.shape[1])))

    pp = jnp.concatenate(
        [
            seg(params["g0"], LANE), seg(params["be0"], LANE),
            seg(params["g1"], HID1), seg(params["be1"], HID1),
            seg(params["g2"], HID2), seg(params["be2"], HID2),
            seg(params["b3"], LANE),
        ],
        axis=1,
    )
    assert pp.shape == (1, PACK_W)
    # b1 / b2 intentionally not packed: dead under training-mode BatchNorm.
    w1 = params["w1"].astype(jnp.bfloat16)
    w2 = params["w2"].astype(jnp.bfloat16)
    w3 = jnp.pad(params["w3"], ((0, 0), (0, LANE - act_dim))).astype(jnp.bfloat16)
    return {"pp": pp, "w1": w1, "w2": w2, "w3": w3}


@functools.partial(jax.jit, static_argnames=("act_dim",))
def pinetwork_forward(obs, packed, *, act_dim):
    batch, obs_dim = obs.shape
    args = (obs, packed["pp"], packed["w1"], packed["w2"], packed["w3"])

    # Small MLP: everything fits in VMEM, single grid point, full-array blocks.
    def full_spec(a):
        return pl.BlockSpec(a.shape, lambda: (0,) * a.ndim)

    out = pl.pallas_call(
        functools.partial(pinetwork_kernel, obs_dim=obs_dim),
        out_shape=jax.ShapeDtypeStruct((batch, LANE), jnp.float32),
        grid=(),
        in_specs=[full_spec(a) for a in args],
        out_specs=pl.BlockSpec((batch, LANE), lambda: (0, 0)),
    )(*args)
    return out[:, :act_dim]


def init_params(key, obs_dim, act_dim):
    """Deterministic init mirroring PiNetwork._init / PyTorch defaults."""
    ks = jax.random.split(key, 6)

    def uniform(k, shape, lim):
        return jax.random.uniform(k, shape, jnp.float32, -lim, lim)

    # lecunishUniformInitializer uses weight.size()[0] == out_features
    lim1 = 1.0 / jnp.sqrt(256.0 / 2.0)
    lim2 = 1.0 / jnp.sqrt(128.0 / 2.0)
    lim3 = 0.003
    # PyTorch Linear bias default: U(-1/sqrt(fan_in), 1/sqrt(fan_in))
    blim1 = 1.0 / jnp.sqrt(float(obs_dim))
    blim2 = 1.0 / jnp.sqrt(256.0)
    blim3 = 1.0 / jnp.sqrt(128.0)

    return {
        "g0": jnp.ones((1, obs_dim), jnp.float32),
        "be0": jnp.zeros((1, obs_dim), jnp.float32),
        "g1": jnp.ones((1, HID1), jnp.float32),
        "be1": jnp.zeros((1, HID1), jnp.float32),
        "g2": jnp.ones((1, HID2), jnp.float32),
        "be2": jnp.zeros((1, HID2), jnp.float32),
        # Linear weights stored as (in, out) so kernel computes x @ W
        "w1": uniform(ks[0], (obs_dim, HID1), lim1),
        "b1": uniform(ks[1], (1, HID1), blim1),   # dead under batch-stats BN
        "w2": uniform(ks[2], (HID1, HID2), lim2),
        "b2": uniform(ks[3], (1, HID2), blim2),   # dead under batch-stats BN
        "w3": uniform(ks[4], (HID2, act_dim), lim3),
        "b3": uniform(ks[5], (1, act_dim), blim3),
    }


def pinetwork_reference(obs, params):
    """Pure-JAX f32 reference with the exact PyTorch training-mode semantics
    (including the fc1/fc2 biases, which cancel under batch-stats BN)."""

    def bn(x, g, b):
        m = jnp.mean(x, axis=0, keepdims=True)
        v = jnp.mean((x - m) ** 2, axis=0, keepdims=True)
        return (x - m) / jnp.sqrt(v + BN_EPS) * g + b

    x = bn(obs, params["g0"], params["be0"])
    h1 = jax.nn.relu(bn(x @ params["w1"] + params["b1"], params["g1"], params["be1"]))
    h2 = jax.nn.relu(bn(h1 @ params["w2"] + params["b2"], params["g2"], params["be2"]))
    return jnp.tanh(h2 @ params["w3"] + params["b3"])


if __name__ == "__main__":
    # Tennis-like shapes, kept small: obs_dim=24, act_dim=2, batch=8
    OBS_DIM, ACT_DIM, BATCH = 24, 2, 8

    key = jax.random.PRNGKey(0)
    pkey, okey = jax.random.split(key)

    params = init_params(pkey, OBS_DIM, ACT_DIM)
    packed = pack_params(params, OBS_DIM, ACT_DIM)
    obs = jax.random.normal(okey, (BATCH, OBS_DIM), jnp.float32)

    out = pinetwork_forward(obs, packed, act_dim=ACT_DIM)
    jax.block_until_ready(out)

    ref = pinetwork_reference(obs, params)

    assert out.shape == (BATCH, ACT_DIM)
    assert bool(jnp.all(jnp.abs(out) <= 1.0))  # tanh output range
    # bf16 MXU operands -> small precision delta vs the f32 reference.
    assert bool(jnp.max(jnp.abs(out - ref)) < 2e-2)
    print("KERNEL_OK")
</pallas_src>

<mosaic_0001>
module attributes {stable_mosaic.version = 11 : i64} {
  func.func @pinetwork_kernel(%arg0: memref<8x24xf32, #tpu.memory_space<vmem>>, %arg1: memref<1x1152xf32, #tpu.memory_space<vmem>>, %arg2: memref<24x256xbf16, #tpu.memory_space<vmem>>, %arg3: memref<256x128xbf16, #tpu.memory_space<vmem>>, %arg4: memref<128x128xbf16, #tpu.memory_space<vmem>>, %arg5: memref<8x128xf32, #tpu.memory_space<vmem>>) attributes {dimension_semantics = [], scalar_prefetch = 0 : i64, scratch_operands = 0 : i64, tpu.core_type = #tpu.core_type<tc>} {
    %c0 = arith.constant 0 : index
    %c0_0 = arith.constant 0 : index
    %0 = vector.load %arg1[%c0, %c0_0] : memref<1x1152xf32, #tpu.memory_space<vmem>>, vector<1x24xf32>
    %c0_1 = arith.constant 0 : index
    %c128 = arith.constant 128 : index
    %1 = vector.load %arg1[%c0_1, %c128] : memref<1x1152xf32, #tpu.memory_space<vmem>>, vector<1x24xf32>
    %c0_2 = arith.constant 0 : index
    %c256 = arith.constant 256 : index
    %2 = vector.load %arg1[%c0_2, %c256] : memref<1x1152xf32, #tpu.memory_space<vmem>>, vector<1x256xf32>
    %c0_3 = arith.constant 0 : index
    %c512 = arith.constant 512 : index
    %3 = vector.load %arg1[%c0_3, %c512] : memref<1x1152xf32, #tpu.memory_space<vmem>>, vector<1x256xf32>
    %c0_4 = arith.constant 0 : index
    %c768 = arith.constant 768 : index
    %4 = vector.load %arg1[%c0_4, %c768] : memref<1x1152xf32, #tpu.memory_space<vmem>>, vector<1x128xf32>
    %c0_5 = arith.constant 0 : index
    %c896 = arith.constant 896 : index
    %5 = vector.load %arg1[%c0_5, %c896] : memref<1x1152xf32, #tpu.memory_space<vmem>>, vector<1x128xf32>
    %c0_6 = arith.constant 0 : index
    %c1024 = arith.constant 1024 : index
    %6 = vector.load %arg1[%c0_6, %c1024] : memref<1x1152xf32, #tpu.memory_space<vmem>>, vector<1x128xf32>
    %c0_7 = arith.constant 0 : index
    %c0_8 = arith.constant 0 : index
    %7 = vector.load %arg0[%c0_7, %c0_8] : memref<8x24xf32, #tpu.memory_space<vmem>>, vector<8x24xf32>
    %cst = arith.constant dense<0.000000e+00> : vector<24xf32>
    %8 = vector.multi_reduction <add>, %7, %cst [0] : vector<8x24xf32> to vector<24xf32>
    %9 = vector.shape_cast %8 : vector<24xf32> to vector<1x24xf32>
    %10 = arith.mulf %7, %7 : vector<8x24xf32>
    %cst_9 = arith.constant dense<0.000000e+00> : vector<24xf32>
    %11 = vector.multi_reduction <add>, %10, %cst_9 [0] : vector<8x24xf32> to vector<24xf32>
    %12 = vector.shape_cast %11 : vector<24xf32> to vector<1x24xf32>
    %cst_10 = arith.constant 1.250000e-01 : f32
    %13 = vector.broadcast %cst_10 : f32 to vector<1x24xf32>
    %14 = arith.mulf %9, %13 : vector<1x24xf32>
    %cst_11 = arith.constant 1.250000e-01 : f32
    %15 = vector.broadcast %cst_11 : f32 to vector<1x24xf32>
    %16 = arith.mulf %12, %15 : vector<1x24xf32>
    %17 = arith.mulf %14, %14 : vector<1x24xf32>
    %18 = arith.subf %16, %17 : vector<1x24xf32>
    %cst_12 = arith.constant 0.000000e+00 : f32
    %19 = vector.broadcast %cst_12 : f32 to vector<1x24xf32>
    %20 = arith.maximumf %18, %19 : vector<1x24xf32>
    %cst_13 = arith.constant 9.99999974E-6 : f32
    %21 = vector.broadcast %cst_13 : f32 to vector<1x24xf32>
    %22 = arith.addf %20, %21 : vector<1x24xf32>
    %23 = math.rsqrt %22 : vector<1x24xf32>
    %24 = arith.mulf %0, %23 : vector<1x24xf32>
    %25 = arith.mulf %14, %24 : vector<1x24xf32>
    %26 = arith.subf %1, %25 : vector<1x24xf32>
    %27 = vector.broadcast %24 : vector<1x24xf32> to vector<8x24xf32>
    %28 = arith.mulf %7, %27 : vector<8x24xf32>
    %29 = vector.broadcast %26 : vector<1x24xf32> to vector<8x24xf32>
    %30 = arith.addf %28, %29 : vector<8x24xf32>
    %31 = arith.truncf %30 : vector<8x24xf32> to vector<8x24xbf16>
    %c0_14 = arith.constant 0 : index
    %c0_15 = arith.constant 0 : index
    %32 = vector.load %arg2[%c0_14, %c0_15] : memref<24x256xbf16, #tpu.memory_space<vmem>>, vector<24x256xbf16>
    %cst_16 = arith.constant dense<0.000000e+00> : vector<8x256xf32>
    %33 = tpu.matmul %31, %32, %cst_16 {dimension_numbers = #tpu.dot_dimension_numbers<[1], [0], [0], [1], [0, 0, 1, 1], [], []>} : vector<8x24xbf16>, vector<24x256xbf16>, vector<8x256xf32> -> vector<8x256xf32>
    %cst_17 = arith.constant dense<0.000000e+00> : vector<256xf32>
    %34 = vector.multi_reduction <add>, %33, %cst_17 [0] : vector<8x256xf32> to vector<256xf32>
    %35 = vector.shape_cast %34 : vector<256xf32> to vector<1x256xf32>
    %36 = arith.mulf %33, %33 : vector<8x256xf32>
    %cst_18 = arith.constant dense<0.000000e+00> : vector<256xf32>
    %37 = vector.multi_reduction <add>, %36, %cst_18 [0] : vector<8x256xf32> to vector<256xf32>
    %38 = vector.shape_cast %37 : vector<256xf32> to vector<1x256xf32>
    %cst_19 = arith.constant 1.250000e-01 : f32
    %39 = vector.broadcast %cst_19 : f32 to vector<1x256xf32>
    %40 = arith.mulf %35, %39 : vector<1x256xf32>
    %cst_20 = arith.constant 1.250000e-01 : f32
    %41 = vector.broadcast %cst_20 : f32 to vector<1x256xf32>
    %42 = arith.mulf %38, %41 : vector<1x256xf32>
    %43 = arith.mulf %40, %40 : vector<1x256xf32>
    %44 = arith.subf %42, %43 : vector<1x256xf32>
    %cst_21 = arith.constant 0.000000e+00 : f32
    %45 = vector.broadcast %cst_21 : f32 to vector<1x256xf32>
    %46 = arith.maximumf %44, %45 : vector<1x256xf32>
    %cst_22 = arith.constant 9.99999974E-6 : f32
    %47 = vector.broadcast %cst_22 : f32 to vector<1x256xf32>
    %48 = arith.addf %46, %47 : vector<1x256xf32>
    %49 = math.rsqrt %48 : vector<1x256xf32>
    %50 = arith.mulf %2, %49 : vector<1x256xf32>
    %51 = arith.mulf %40, %50 : vector<1x256xf32>
    %52 = arith.subf %3, %51 : vector<1x256xf32>
    %53 = vector.broadcast %50 : vector<1x256xf32> to vector<8x256xf32>
    %54 = arith.mulf %33, %53 : vector<8x256xf32>
    %55 = vector.broadcast %52 : vector<1x256xf32> to vector<8x256xf32>
    %56 = arith.addf %54, %55 : vector<8x256xf32>
    %cst_23 = arith.constant 0.000000e+00 : f32
    %57 = vector.broadcast %cst_23 : f32 to vector<8x256xf32>
    %58 = arith.maximumf %56, %57 : vector<8x256xf32>
    %59 = arith.truncf %58 : vector<8x256xf32> to vector<8x256xbf16>
    %c0_24 = arith.constant 0 : index
    %c0_25 = arith.constant 0 : index
    %60 = vector.load %arg3[%c0_24, %c0_25] : memref<256x128xbf16, #tpu.memory_space<vmem>>, vector<256x128xbf16>
    %cst_26 = arith.constant dense<0.000000e+00> : vector<8x128xf32>
    %61 = tpu.matmul %59, %60, %cst_26 {dimension_numbers = #tpu.dot_dimension_numbers<[1], [0], [0], [1], [0, 0, 1, 1], [], []>} : vector<8x256xbf16>, vector<256x128xbf16>, vector<8x128xf32> -> vector<8x128xf32>
    %cst_27 = arith.constant dense<0.000000e+00> : vector<128xf32>
    %62 = vector.multi_reduction <add>, %61, %cst_27 [0] : vector<8x128xf32> to vector<128xf32>
    %63 = vector.shape_cast %62 : vector<128xf32> to vector<1x128xf32>
    %64 = arith.mulf %61, %61 : vector<8x128xf32>
    %cst_28 = arith.constant dense<0.000000e+00> : vector<128xf32>
    %65 = vector.multi_reduction <add>, %64, %cst_28 [0] : vector<8x128xf32> to vector<128xf32>
    %66 = vector.shape_cast %65 : vector<128xf32> to vector<1x128xf32>
    %cst_29 = arith.constant 1.250000e-01 : f32
    %67 = vector.broadcast %cst_29 : f32 to vector<1x128xf32>
    %68 = arith.mulf %63, %67 : vector<1x128xf32>
    %cst_30 = arith.constant 1.250000e-01 : f32
    %69 = vector.broadcast %cst_30 : f32 to vector<1x128xf32>
    %70 = arith.mulf %66, %69 : vector<1x128xf32>
    %71 = arith.mulf %68, %68 : vector<1x128xf32>
    %72 = arith.subf %70, %71 : vector<1x128xf32>
    %cst_31 = arith.constant 0.000000e+00 : f32
    %73 = vector.broadcast %cst_31 : f32 to vector<1x128xf32>
    %74 = arith.maximumf %72, %73 : vector<1x128xf32>
    %cst_32 = arith.constant 9.99999974E-6 : f32
    %75 = vector.broadcast %cst_32 : f32 to vector<1x128xf32>
    %76 = arith.addf %74, %75 : vector<1x128xf32>
    %77 = math.rsqrt %76 : vector<1x128xf32>
    %78 = arith.mulf %4, %77 : vector<1x128xf32>
    %79 = arith.mulf %68, %78 : vector<1x128xf32>
    %80 = arith.subf %5, %79 : vector<1x128xf32>
    %81 = vector.broadcast %78 : vector<1x128xf32> to vector<8x128xf32>
    %82 = arith.mulf %61, %81 : vector<8x128xf32>
    %83 = vector.broadcast %80 : vector<1x128xf32> to vector<8x128xf32>
    %84 = arith.addf %82, %83 : vector<8x128xf32>
    %cst_33 = arith.constant 0.000000e+00 : f32
    %85 = vector.broadcast %cst_33 : f32 to vector<8x128xf32>
    %86 = arith.maximumf %84, %85 : vector<8x128xf32>
    %87 = arith.truncf %86 : vector<8x128xf32> to vector<8x128xbf16>
    %c0_34 = arith.constant 0 : index
    %c0_35 = arith.constant 0 : index
    %88 = vector.load %arg4[%c0_34, %c0_35] : memref<128x128xbf16, #tpu.memory_space<vmem>>, vector<128x128xbf16>
    %cst_36 = arith.constant dense<0.000000e+00> : vector<8x128xf32>
    %89 = tpu.matmul %87, %88, %cst_36 {dimension_numbers = #tpu.dot_dimension_numbers<[1], [0], [0], [1], [0, 0, 1, 1], [], []>} : vector<8x128xbf16>, vector<128x128xbf16>, vector<8x128xf32> -> vector<8x128xf32>
    %90 = vector.broadcast %6 : vector<1x128xf32> to vector<8x128xf32>
    %91 = arith.addf %89, %90 : vector<8x128xf32>
    %92 = math.tanh %91 : vector<8x128xf32>
    %c0_37 = arith.constant 0 : index
    %c0_38 = arith.constant 0 : index
    %93 = vector.load %arg5[%c0_37, %c0_38] : memref<8x128xf32, #tpu.memory_space<vmem>>, vector<8x128xf32>
    tpu.vector_store %arg5[%c0_37, %c0_38], %92 {strides = array<i32>} : memref<8x128xf32, #tpu.memory_space<vmem>>, vector<8x128xf32>,
    return
  }
}

</mosaic_0001>

<llo_original>
// kernel: pinetwork_forward.1
$region0: #{pinetwork_forward.1}
  #allocation0 [shape = 'u32[]', space=smem, size = 0x4, offset = 0x4, fixed_abs, tag = 'smem constant byte address 0x4 - core index']
  #allocation1 [shape = 'u32[144,128]{1,0:T(1,128)}', space=vmem, size = 0x12000, scoped, tag = 'internal scratch']
  %s0 = inlined_call_operand.hbm [shape: f32[8,24], index: 0, kind: input, shape index: {}]
  %s1 = inlined_call_operand.hbm [shape: f32[1,1152], index: 1, kind: input, shape index: {}]
  %s2 = inlined_call_operand.hbm [shape: bf16[24,256], index: 2, kind: input, shape index: {}]
  %s3 = inlined_call_operand.hbm [shape: bf16[256,128], index: 3, kind: input, shape index: {}]
  %s4 = inlined_call_operand.hbm [shape: bf16[128,128], index: 4, kind: input, shape index: {}]
  %s5 = inlined_call_operand.vmem [shape: f32[8,128], index: 5, kind: output, shape index: {}]
  %s6 = sld [smem:[#allocation0]]
  $region50: #{pinetwork_forward.1} parent=0
    _
  %s8 = ssub.s32 1, %s6
  %s9 = scalar_select 0, %s8, %s6
  $region1: #{pinetwork_forward.1} parent=0
    #allocation2 [shape = 'u8[4096]{0}', space=vmem, size = 0x1000, scoped, tag = 'input window, operand 0, single buffered']
    #allocation3 [shape = 's32[1]{0}', space=sflag, size = 0x4, scoped, tag = 'scoped memory for pinetwork_forward.1']
    #allocation4 [shape = 'u8[4608]{0}', space=vmem, size = 0x1400, scoped, tag = 'input window, operand 1, single buffered']
    #allocation5 [shape = 's32[1]{0}', space=sflag, size = 0x4, scoped, tag = 'scoped memory for pinetwork_forward.1']
    #allocation6 [shape = 'u8[12288]{0}', space=vmem, size = 0x3000, scoped, tag = 'input window, operand 2, single buffered']
    #allocation7 [shape = 'u8[65536]{0}', space=vmem, size = 0x10000, scoped, tag = 'input window, operand 3, single buffered']
    #allocation8 [shape = 's32[1]{0}', space=sflag, size = 0x4, scoped, tag = 'scoped memory for pinetwork_forward.1']
    #allocation9 [shape = 'u8[32768]{0}', space=vmem, size = 0x8000, scoped, tag = 'input window, operand 4, single buffered']
    %10 = vsyncpa [#allocation3], 0
    %11 = vsyncpa [#allocation5], 0
    %12 = vsyncpa [#allocation8], 0
    // Predicated region
    $region2: #{pinetwork_forward.1} parent=1 // pred_check
      _
    $region3: #{pinetwork_forward.1} parent=1 // pred_check_branch
      %14 = sbr.rel (0) target = $region5
    $region4: #{pinetwork_forward.1} parent=1 // pred_region
      %s16 = ssub.s32 128, 128
      %17 = vsyncadd [#allocation3], %s16
      %s19 = sshll.u32 [#allocation2], 4
      %s20 = int_to_ptr.vmem [resolvable:$true] %s19
      %22 = dma.hbm_to_vmem [thread:$0]  %s0, 128, %s20, [#allocation3]
    $region5: #{pinetwork_forward.1} parent=1 // pred_fallthru
      _
    // Predicated region
    $region6: #{pinetwork_forward.1} parent=1 // pred_check
      _
    $region7: #{pinetwork_forward.1} parent=1 // pred_check_branch
      %24 = sbr.rel (0) target = $region9
    $region8: #{pinetwork_forward.1} parent=1 // pred_region
      %s26 = ssub.s32 144, 144
      %27 = vsyncadd [#allocation5], %s26
      %s29 = sshll.u32 [#allocation4], 4
      %s30 = int_to_ptr.vmem [resolvable:$true] %s29
      %32 = dma.hbm_to_vmem [thread:$0]  %s1, 144, %s30, [#allocation5]
    $region9: #{pinetwork_forward.1} parent=1 // pred_fallthru
      _
    // Predicated region
    $region10: #{pinetwork_forward.1} parent=1 // pred_check
      _
    $region11: #{pinetwork_forward.1} parent=1 // pred_check_branch
      %34 = sbr.rel (0) target = $region13
    $region12: #{pinetwork_forward.1} parent=1 // pred_region
      %s36 = ssub.s32 384, 384
      %37 = vsyncadd [#allocation5], %s36
      %s38 = sshll.u32 [#allocation6], 4
      %s39 = int_to_ptr.vmem [resolvable:$true] %s38
      %44 = dma.hbm_to_vmem [thread:$0]  %s2, 384, %s39, [#allocation5], 128, 128, 8
    $region13: #{pinetwork_forward.1} parent=1 // pred_fallthru
      _
    // Predicated region
    $region14: #{pinetwork_forward.1} parent=1 // pred_check
      _
    $region15: #{pinetwork_forward.1} parent=1 // pred_check_branch
      %46 = sbr.rel (0) target = $region17
    $region16: #{pinetwork_forward.1} parent=1 // pred_region
      %s48 = ssub.s32 2048, 2048
      %49 = vsyncadd [#allocation8], %s48
      %s50 = sshll.u32 [#allocation7], 4
      %s51 = int_to_ptr.vmem [resolvable:$true] %s50
      %56 = dma.hbm_to_vmem [thread:$0]  %s3, 2048, %s51, [#allocation8], 64, 64, 4
    $region17: #{pinetwork_forward.1} parent=1 // pred_fallthru
      _
    // Predicated region
    $region18: #{pinetwork_forward.1} parent=1 // pred_check
      _
    $region19: #{pinetwork_forward.1} parent=1 // pred_check_branch
      %58 = sbr.rel (0) target = $region21
    $region20: #{pinetwork_forward.1} parent=1 // pred_region
      %s60 = ssub.s32 1024, 1024
      %61 = vsyncadd [#allocation8], %s60
      %s62 = sshll.u32 [#allocation9], 4
      %s63 = int_to_ptr.vmem [resolvable:$true] %s62
      %68 = dma.hbm_to_vmem [thread:$0]  %s4, 1024, %s63, [#allocation8], 64, 64, 4
    $region21: #{pinetwork_forward.1} parent=1 // pred_fallthru
      _
    // Predicated region
    $region22: #{pinetwork_forward.1} parent=1 // pred_check
      _
    $region23: #{pinetwork_forward.1} parent=1 // pred_check_branch
      %70 = sbr.rel (0) target = $region25
    $region24: #{pinetwork_forward.1} parent=1 // pred_region
      %71 = dma.done [#allocation3], 128
    $region25: #{pinetwork_forward.1} parent=1 // pred_fallthru
      _
    // Predicated region
    $region26: #{pinetwork_forward.1} parent=1 // pred_check
      _
    $region27: #{pinetwork_forward.1} parent=1 // pred_check_branch
      %73 = sbr.rel (0) target = $region29
    $region28: #{pinetwork_forward.1} parent=1 // pred_region
      %74 = dma.done [#allocation5], 144
    $region29: #{pinetwork_forward.1} parent=1 // pred_fallthru
      _
    // Predicated region
    $region30: #{pinetwork_forward.1} parent=1 // pred_check
      _
    $region31: #{pinetwork_forward.1} parent=1 // pred_check_branch
      %76 = sbr.rel (0) target = $region33
    $region32: #{pinetwork_forward.1} parent=1 // pred_region
      %77 = dma.done [#allocation5], 384
    $region33: #{pinetwork_forward.1} parent=1 // pred_fallthru
      _
    // Predicated region
    $region34: #{pinetwork_forward.1} parent=1 // pred_check
      _
    $region35: #{pinetwork_forward.1} parent=1 // pred_check_branch
      %79 = sbr.rel (0) target = $region37
    $region36: #{pinetwork_forward.1} parent=1 // pred_region
      %80 = dma.done [#allocation8], 2048
    $region37: #{pinetwork_forward.1} parent=1 // pred_fallthru
      _
    // Predicated region
    $region38: #{pinetwork_forward.1} parent=1 // pred_check
      _
    $region39: #{pinetwork_forward.1} parent=1 // pred_check_branch
      %82 = sbr.rel (0) target = $region41
    $region40: #{pinetwork_forward.1} parent=1 // pred_region
      %83 = dma.done [#allocation8], 1024
    $region41: #{pinetwork_forward.1} parent=1 // pred_fallthru
      _
    %v85 = vld [vmem:[#allocation4] sm:$0x1]
    %v86 = vld [vmem:[#allocation4 + $0x1] sm:$0x1]
    %v87 = vld [vmem:[#allocation4 + $0x2] sm:$0x3]
    %v88 = vld [vmem:[#allocation4 + $0x4] sm:$0x3]
    %v89 = vld [vmem:[#allocation4 + $0x6] sm:$0x1]
    %v90 = vld [vmem:[#allocation4 + $0x7] sm:$0x1]
    %v91 = vld [vmem:[#allocation4 + $0x8] sm:$0x1]
    %v92 = vld [vmem:[#allocation2] sm:$0xff]
    %vm93 = vcmask 195584
    %v94 = vsel %vm93, %v92, 0.0
    %v95 = vrot.slane %v94, 4
    %v96 = vadd.f32 %v94, %v95
    %v97 = vrot.slane %v96, 2
    %v98 = vadd.f32 %v96, %v97
    %v99 = vrot.slane %v98, 1
    %v100 = vadd.f32 %v98, %v99
    %v101 = vmul.f32 %v92, %v92
    %v102 = vsel %vm93, %v101, 0.0
    %v103 = vrot.slane %v102, 4
    %v104 = vadd.f32 %v102, %v103
    %v105 = vrot.slane %v104, 2
    %v106 = vadd.f32 %v104, %v105
    %v107 = vrot.slane %v106, 1
    %v108 = vadd.f32 %v106, %v107
    %v109 = vmul.f32 %v100, 0.125
    %v110 = vmul.f32 %v108, 0.125
    %v111 = vmul.f32 %v109, %v109
    %v112 = vsub.f32 %v110, %v111
    %v113 = vmax.f32 %v112, 0.0
    %v114 = vadd.f32 %v113, 1e-05
    %v115 = vrsqrt.pop %v114
    %v116 = vmul.f32 %v85, %v115
    %v117 = vmul.f32 %v109, %v116
    %v118 = vsub.f32 %v86, %v117
    %v120 = vlaneseq
    %v121 = vshrl.u32 %v120, 7
    %v122 = vsub.s32 0, %v121
    %v123 = vrot.slane %v116, %v122
    %v125 = vmul.f32 %v92, %v123
    %v127 = vlaneseq
    %v128 = vshrl.u32 %v127, 7
    %v129 = vsub.s32 0, %v128
    %v130 = vrot.slane %v118, %v129
    %v132 = vadd.f32 %v125, %v130
    %v133 = vpack.c.bf16 %v132, %v132
    %v134 = vld [vmem:[#allocation6] sm:$0xff]
    %v135 = vld [vmem:[#allocation6 + $0x8] sm:$0xff]
    %v136 = vld [vmem:[#allocation6 + $0x10] sm:$0xff]
    %v140 = vunpack.c.l.b16 %v134
    %v141 = vunpack.c.h.b16 %v134
    %v142 = vunpack.c.l.b16 %v135
    %v143 = vunpack.c.h.b16 %v135
    %v144 = vunpack.c.l.b16 %v136
    %v145 = vunpack.c.h.b16 %v136
    %v146 = vpack.c.b16 %v142, %v140
    %v147 = vpack.c.b16 %v143, %v141
    %v148 = vpack.c.b16 %v144, %v144
    %v149 = vpack.c.b16 %v145, %v145
    %v153 = vsel %vm93, %v133, 0
    %vm155 = vcmask 1043456
    %v157 = vsel %vm155, %v148, 0
    %v160 = vsel %vm155, %v149, 0
    %162 = vmatprep.subr.bf16.mxu0 %v147
    %163 = vmatpush1.bf16.msra.mxu0 %v146
    %164 = vmatprep.subr.bf16.mxu0 %v160
    %165 = vmatpush1.bf16.msra.mxu0 %v157
    %166 = vmatprep.subr.bf16.mxu0 0
    %167 = vmatpush1.bf16.msra.mxu0 0
    %168 = vmatprep.subr.bf16.mxu0 0
    %169 = vmatpush1.bf16.msra.mxu0 0
    %170 = vmatprep.subr.bf16.mxu0 0
    %171 = vmatpush1.bf16.msra.mxu0 0
    %172 = vmatprep.subr.bf16.mxu0 0
    %173 = vmatpush1.bf16.msra.mxu0 0
    %174 = vmatprep.subr.bf16.mxu0 0
    %175 = vmatpush1.bf16.msra.mxu0 0
    %176 = vmatprep.subr.bf16.mxu0 0
    %177 = vmatpush1.bf16.msra.mxu0 0
    %178 = vmatprep.subr.bf16.mxu0 0
    %179 = vmatpush1.bf16.msra.mxu0 0
    %180 = vmatprep.subr.bf16.mxu0 0
    %181 = vmatpush1.bf16.msra.mxu0 0
    %182 = vmatprep.subr.bf16.mxu0 0
    %183 = vmatpush1.bf16.msra.mxu0 0
    %184 = vmatprep.subr.bf16.mxu0 0
    %185 = vmatpush1.bf16.msra.mxu0 0
    %186 = vmatprep.subr.bf16.mxu0 0
    %187 = vmatpush1.bf16.msra.mxu0 0
    %188 = vmatprep.subr.bf16.mxu0 0
    %189 = vmatpush1.bf16.msra.mxu0 0
    %190 = vmatprep.subr.bf16.mxu0 0
    %191 = vmatpush1.bf16.msra.mxu0 0
    %192 = vmatprep.subr.bf16.mxu0 0
    %193 = vmatpush1.bf16.msra.mxu0 0
    %194 = vmatprep.mubr.bf16.mxu0 0
    %195 = vmatmul.mubr.bf16.gmra.mrb[0].mxu0 %v153
    %v196 = vpop.f32.mrb[0].mxu0
    %v197 = vadd.f32 0.0, %v196
    %v198 = vpop.f32.mrb[0].mxu0
    %v199 = vadd.f32 0.0, %v198
    %v200 = vpop.f32.mrb[0].mxu0
    %v201 = vpop.f32.mrb[0].mxu0
    %202 = vdwg.mxu0
    %v203 = vrot.slane %v197, 4
    %v204 = vadd.f32 %v197, %v203
    %v205 = vrot.slane %v204, 2
    %v206 = vadd.f32 %v204, %v205
    %v207 = vrot.slane %v206, 1
    %v208 = vadd.f32 %v206, %v207
    %v209 = vrot.slane %v199, 4
    %v210 = vadd.f32 %v199, %v209
    %v211 = vrot.slane %v210, 2
    %v212 = vadd.f32 %v210, %v211
    %v213 = vrot.slane %v212, 1
    %v214 = vadd.f32 %v212, %v213
    %v215 = vmul.f32 %v197, %v197
    %v216 = vmul.f32 %v199, %v199
    %v217 = vrot.slane %v215, 4
    %v218 = vadd.f32 %v215, %v217
    %v219 = vrot.slane %v218, 2
    %v220 = vadd.f32 %v218, %v219
    %v221 = vrot.slane %v220, 1
    %v222 = vadd.f32 %v220, %v221
    %v223 = vrot.slane %v216, 4
    %v224 = vadd.f32 %v216, %v223
    %v225 = vrot.slane %v224, 2
    %v226 = vadd.f32 %v224, %v225
    %v227 = vrot.slane %v226, 1
    %v228 = vadd.f32 %v226, %v227
    %v229 = vmul.f32 %v208, 0.125
    %v230 = vmul.f32 %v214, 0.125
    %v231 = vmul.f32 %v222, 0.125
    %v232 = vmul.f32 %v228, 0.125
    %v233 = vmul.f32 %v229, %v229
    %v234 = vmul.f32 %v230, %v230
    %v235 = vsub.f32 %v231, %v233
    %v236 = vsub.f32 %v232, %v234
    %v237 = vmax.f32 %v235, 0.0
    %v238 = vmax.f32 %v236, 0.0
    %v239 = vadd.f32 %v237, 1e-05
    %v240 = vadd.f32 %v238, 1e-05
    %v241 = vrsqrt.pop %v239
    %v242 = vrsqrt.pop %v240
    %v245 = vcombine.low %v241, %v242
    %v247 = vunpack.c.l.s4 1966171168
    %v248 = vunpack.c.0.s8 %v247
    %v249 = vlaneseq
    %v250 = vshrl.u32 %v249, 7
    %v251 = vsub.s32 %v248, %v250
    %v252 = vrot.slane %v245, %v251
    %v254 = vunpack.c.l.s4 1966171168
    %v255 = vunpack.c.0.s8 %v254
    %v256 = vlaneseq
    %v257 = vshrl.u32 %v256, 7
    %v258 = vsub.s32 %v255, %v257
    %v259 = vrot.slane %v252, %v258
    %v261 = vmul.f32 %v87, %v259
    %v263 = vlaneseq
    %v264 = vshrl.u32 %v263, 7
    %v265 = vsub.s32 0, %v264
    %v266 = vrot.slane %v261, %v265
    %v267 = vlaneseq
    %v268 = vshrl.u32 %v267, 7
    %v269 = vsub.s32 1, %v268
    %v270 = vrot.slane %v261, %v269
    %v273 = vmul.f32 %v229, %v266
    %v274 = vmul.f32 %v230, %v270
    %v277 = vcombine.low %v273, %v274
    %v279 = vunpack.c.l.s4 1966171168
    %v280 = vunpack.c.0.s8 %v279
    %v281 = vlaneseq
    %v282 = vshrl.u32 %v281, 7
    %v283 = vsub.s32 %v280, %v282
    %v284 = vrot.slane %v277, %v283
    %v286 = vunpack.c.l.s4 1966171168
    %v287 = vunpack.c.0.s8 %v286
    %v288 = vlaneseq
    %v289 = vshrl.u32 %v288, 7
    %v290 = vsub.s32 %v287, %v289
    %v291 = vrot.slane %v284, %v290
    %v293 = vsub.f32 %v88, %v291
    %v294 = vmul.f32 %v197, %v266
    %v295 = vmul.f32 %v199, %v270
    %v297 = vlaneseq
    %v298 = vshrl.u32 %v297, 7
    %v299 = vsub.s32 0, %v298
    %v300 = vrot.slane %v293, %v299
    %v301 = vlaneseq
    %v302 = vshrl.u32 %v301, 7
    %v303 = vsub.s32 1, %v302
    %v304 = vrot.slane %v293, %v303
    %v307 = vadd.f32 %v294, %v300
    %v308 = vadd.f32 %v295, %v304
    %v309 = vmax.f32 %v307, 0.0
    %v310 = vmax.f32 %v308, 0.0
    %v311 = vpack.c.bf16 %v309, %v309
    %v312 = vpack.c.bf16 %v310, %v310
    %v313 = vld [vmem:[#allocation7] sm:$0xf]
    %v314 = vld [vmem:[#allocation7 + $0x4] sm:$0xf]
    %v315 = vld [vmem:[#allocation7 + $0x8] sm:$0xf]
    %v316 = vld [vmem:[#allocation7 + $0xc] sm:$0xf]
    %v317 = vld [vmem:[#allocation7 + $0x10] sm:$0xf]
    %v318 = vld [vmem:[#allocation7 + $0x14] sm:$0xf]
    %v319 = vld [vmem:[#allocation7 + $0x18] sm:$0xf]
    %v320 = vld [vmem:[#allocation7 + $0x1c] sm:$0xf]
    %v321 = vld [vmem:[#allocation7 + $0x20] sm:$0xf]
    %v322 = vld [vmem:[#allocation7 + $0x24] sm:$0xf]
    %v323 = vld [vmem:[#allocation7 + $0x28] sm:$0xf]
    %v324 = vld [vmem:[#allocation7 + $0x2c] sm:$0xf]
    %v325 = vld [vmem:[#allocation7 + $0x30] sm:$0xf]
    %v326 = vld [vmem:[#allocation7 + $0x34] sm:$0xf]
    %v327 = vld [vmem:[#allocation7 + $0x38] sm:$0xf]
    %v328 = vld [vmem:[#allocation7 + $0x3c] sm:$0xf]
    %v329 = vld [vmem:[#allocation7 + $0x40] sm:$0xf]
    %v330 = vld [vmem:[#allocation7 + $0x44] sm:$0xf]
    %v331 = vld [vmem:[#allocation7 + $0x48] sm:$0xf]
    %v332 = vld [vmem:[#allocation7 + $0x4c] sm:$0xf]
    %v333 = vld [vmem:[#allocation7 + $0x50] sm:$0xf]
    %v334 = vld [vmem:[#allocation7 + $0x54] sm:$0xf]
    %v335 = vld [vmem:[#allocation7 + $0x58] sm:$0xf]
    %v336 = vld [vmem:[#allocation7 + $0x5c] sm:$0xf]
    %v337 = vld [vmem:[#allocation7 + $0x60] sm:$0xf]
    %v338 = vld [vmem:[#allocation7 + $0x64] sm:$0xf]
    %v339 = vld [vmem:[#allocation7 + $0x68] sm:$0xf]
    %v340 = vld [vmem:[#allocation7 + $0x6c] sm:$0xf]
    %v341 = vld [vmem:[#allocation7 + $0x70] sm:$0xf]
    %v342 = vld [vmem:[#allocation7 + $0x74] sm:$0xf]
    %v343 = vld [vmem:[#allocation7 + $0x78] sm:$0xf]
    %v344 = vld [vmem:[#allocation7 + $0x7c] sm:$0xf]
    %v377 = vunpack.c.l.b16 %v313
    %v378 = vunpack.c.l.b16 %v314
    %v379 = vunpack.c.l.b16 %v315
    %v380 = vunpack.c.l.b16 %v316
    %v381 = vunpack.c.l.b16 %v317
    %v382 = vunpack.c.l.b16 %v318
    %v383 = vunpack.c.l.b16 %v319
    %v384 = vunpack.c.l.b16 %v320
    %v385 = vunpack.c.l.b16 %v321
    %v386 = vunpack.c.l.b16 %v322
    %v387 = vunpack.c.l.b16 %v323
    %v388 = vunpack.c.l.b16 %v324
    %v389 = vunpack.c.l.b16 %v325
    %v390 = vunpack.c.l.b16 %v326
    %v391 = vunpack.c.l.b16 %v327
    %v392 = vunpack.c.l.b16 %v328
    %v393 = vunpack.c.l.b16 %v329
    %v394 = vunpack.c.l.b16 %v330
    %v395 = vunpack.c.l.b16 %v331
    %v396 = vunpack.c.l.b16 %v332
    %v397 = vunpack.c.l.b16 %v333
    %v398 = vunpack.c.l.b16 %v334
    %v399 = vunpack.c.l.b16 %v335
    %v400 = vunpack.c.l.b16 %v336
    %v401 = vunpack.c.l.b16 %v337
    %v402 = vunpack.c.l.b16 %v338
    %v403 = vunpack.c.l.b16 %v339
    %v404 = vunpack.c.l.b16 %v340
    %v405 = vunpack.c.l.b16 %v341
    %v406 = vunpack.c.l.b16 %v342
    %v407 = vunpack.c.l.b16 %v343
    %v408 = vunpack.c.l.b16 %v344
    %v409 = vpack.c.b16 %v378, %v377
    %v410 = vpack.c.b16 %v380, %v379
    %v411 = vpack.c.b16 %v382, %v381
    %v412 = vpack.c.b16 %v384, %v383
    %v413 = vpack.c.b16 %v386, %v385
    %v414 = vpack.c.b16 %v388, %v387
    %v415 = vpack.c.b16 %v390, %v389
    %v416 = vpack.c.b16 %v392, %v391
    %v417 = vpack.c.b16 %v394, %v393
    %v418 = vpack.c.b16 %v396, %v395
    %v419 = vpack.c.b16 %v398, %v397
    %v420 = vpack.c.b16 %v400, %v399
    %v421 = vpack.c.b16 %v402, %v401
    %v422 = vpack.c.b16 %v404, %v403
    %v423 = vpack.c.b16 %v406, %v405
    %v424 = vpack.c.b16 %v408, %v407
    %441 = vmatprep.subr.bf16.mxu0 0
    %442 = vmatpush1.bf16.msra.mxu0 %v409
    %443 = vmatprep.subr.bf16.mxu0 0
    %444 = vmatpush1.bf16.msra.mxu0 %v410
    %445 = vmatprep.subr.bf16.mxu0 0
    %446 = vmatpush1.bf16.msra.mxu0 %v411
    %447 = vmatprep.subr.bf16.mxu0 0
    %448 = vmatpush1.bf16.msra.mxu0 %v412
    %449 = vmatprep.subr.bf16.mxu0 0
    %450 = vmatpush1.bf16.msra.mxu0 %v413
    %451 = vmatprep.subr.bf16.mxu0 0
    %452 = vmatpush1.bf16.msra.mxu0 %v414
    %453 = vmatprep.subr.bf16.mxu0 0
    %454 = vmatpush1.bf16.msra.mxu0 %v415
    %455 = vmatprep.subr.bf16.mxu0 0
    %456 = vmatpush1.bf16.msra.mxu0 %v416
    %457 = vmatprep.subr.bf16.mxu0 0
    %458 = vmatpush1.bf16.msra.mxu0 %v417
    %459 = vmatprep.subr.bf16.mxu0 0
    %460 = vmatpush1.bf16.msra.mxu0 %v418
    %461 = vmatprep.subr.bf16.mxu0 0
    %462 = vmatpush1.bf16.msra.mxu0 %v419
    %463 = vmatprep.subr.bf16.mxu0 0
    %464 = vmatpush1.bf16.msra.mxu0 %v420
    %465 = vmatprep.subr.bf16.mxu0 0
    %466 = vmatpush1.bf16.msra.mxu0 %v421
    %467 = vmatprep.subr.bf16.mxu0 0
    %468 = vmatpush1.bf16.msra.mxu0 %v422
    %469 = vmatprep.subr.bf16.mxu0 0
    %470 = vmatpush1.bf16.msra.mxu0 %v423
    %471 = vmatprep.subr.bf16.mxu0 0
    %472 = vmatpush1.bf16.msra.mxu0 %v424
    %473 = vmatprep.mubr.bf16.mxu0 %v312
    %474 = vmatmul.mubr.bf16.gmra.mrb[0].mxu0 %v311
    %v475 = vpop.f32.mrb[0].mxu0
    %v476 = vadd.f32 0.0, %v475
    %v477 = vpop.f32.mrb[0].mxu0
    %v478 = vpop.f32.mrb[0].mxu0
    %v479 = vpop.f32.mrb[0].mxu0
    %480 = vdwg.mxu0
    %v481 = vrot.slane %v476, 4
    %v482 = vadd.f32 %v476, %v481
    %v483 = vrot.slane %v482, 2
    %v484 = vadd.f32 %v482, %v483
    %v485 = vrot.slane %v484, 1
    %v486 = vadd.f32 %v484, %v485
    %v487 = vmul.f32 %v476, %v476
    %v488 = vrot.slane %v487, 4
    %v489 = vadd.f32 %v487, %v488
    %v490 = vrot.slane %v489, 2
    %v491 = vadd.f32 %v489, %v490
    %v492 = vrot.slane %v491, 1
    %v493 = vadd.f32 %v491, %v492
    %v494 = vmul.f32 %v486, 0.125
    %v495 = vmul.f32 %v493, 0.125
    %v496 = vmul.f32 %v494, %v494
    %v497 = vsub.f32 %v495, %v496
    %v498 = vmax.f32 %v497, 0.0
    %v499 = vadd.f32 %v498, 1e-05
    %v500 = vrsqrt.pop %v499
    %v501 = vmul.f32 %v89, %v500
    %v502 = vmul.f32 %v494, %v501
    %v503 = vsub.f32 %v90, %v502
    %v505 = vlaneseq
    %v506 = vshrl.u32 %v505, 7
    %v507 = vsub.s32 0, %v506
    %v508 = vrot.slane %v501, %v507
    %v510 = vmul.f32 %v476, %v508
    %v512 = vlaneseq
    %v513 = vshrl.u32 %v512, 7
    %v514 = vsub.s32 0, %v513
    %v515 = vrot.slane %v503, %v514
    %v517 = vadd.f32 %v510, %v515
    %v518 = vmax.f32 %v517, 0.0
    %v519 = vpack.c.bf16 %v518, %v518
    %v520 = vld [vmem:[#allocation9] sm:$0xf]
    %v521 = vld [vmem:[#allocation9 + $0x4] sm:$0xf]
    %v522 = vld [vmem:[#allocation9 + $0x8] sm:$0xf]
    %v523 = vld [vmem:[#allocation9 + $0xc] sm:$0xf]
    %v524 = vld [vmem:[#allocation9 + $0x10] sm:$0xf]
    %v525 = vld [vmem:[#allocation9 + $0x14] sm:$0xf]
    %v526 = vld [vmem:[#allocation9 + $0x18] sm:$0xf]
    %v527 = vld [vmem:[#allocation9 + $0x1c] sm:$0xf]
    %v528 = vld [vmem:[#allocation9 + $0x20] sm:$0xf]
    %v529 = vld [vmem:[#allocation9 + $0x24] sm:$0xf]
    %v530 = vld [vmem:[#allocation9 + $0x28] sm:$0xf]
    %v531 = vld [vmem:[#allocation9 + $0x2c] sm:$0xf]
    %v532 = vld [vmem:[#allocation9 + $0x30] sm:$0xf]
    %v533 = vld [vmem:[#allocation9 + $0x34] sm:$0xf]
    %v534 = vld [vmem:[#allocation9 + $0x38] sm:$0xf]
    %v535 = vld [vmem:[#allocation9 + $0x3c] sm:$0xf]
    %v537 = vlaneseq
    %v538 = vshrl.u32 %v537, 7
    %v539 = vsub.s32 0, %v538
    %v540 = vrot.slane %v91, %v539
    %v558 = vunpack.c.l.b16 %v520
    %v559 = vunpack.c.l.b16 %v521
    %v560 = vunpack.c.l.b16 %v522
    %v561 = vunpack.c.l.b16 %v523
    %v562 = vunpack.c.l.b16 %v524
    %v563 = vunpack.c.l.b16 %v525
    %v564 = vunpack.c.l.b16 %v526
    %v565 = vunpack.c.l.b16 %v527
    %v566 = vunpack.c.l.b16 %v528
    %v567 = vunpack.c.l.b16 %v529
    %v568 = vunpack.c.l.b16 %v530
    %v569 = vunpack.c.l.b16 %v531
    %v570 = vunpack.c.l.b16 %v532
    %v571 = vunpack.c.l.b16 %v533
    %v572 = vunpack.c.l.b16 %v534
    %v573 = vunpack.c.l.b16 %v535
    %v574 = vpack.c.b16 %v559, %v558
    %v575 = vpack.c.b16 %v561, %v560
    %v576 = vpack.c.b16 %v563, %v562
    %v577 = vpack.c.b16 %v565, %v564
    %v578 = vpack.c.b16 %v567, %v566
    %v579 = vpack.c.b16 %v569, %v568
    %v580 = vpack.c.b16 %v571, %v570
    %v581 = vpack.c.b16 %v573, %v572
    %590 = vmatprep.subr.bf16.mxu0 0
    %591 = vmatpush1.bf16.msra.mxu0 %v574
    %592 = vmatprep.subr.bf16.mxu0 0
    %593 = vmatpush1.bf16.msra.mxu0 %v575
    %594 = vmatprep.subr.bf16.mxu0 0
    %595 = vmatpush1.bf16.msra.mxu0 %v576
    %596 = vmatprep.subr.bf16.mxu0 0
    %597 = vmatpush1.bf16.msra.mxu0 %v577
    %598 = vmatprep.subr.bf16.mxu0 0
    %599 = vmatpush1.bf16.msra.mxu0 %v578
    %600 = vmatprep.subr.bf16.mxu0 0
    %601 = vmatpush1.bf16.msra.mxu0 %v579
    %602 = vmatprep.subr.bf16.mxu0 0
    %603 = vmatpush1.bf16.msra.mxu0 %v580
    %604 = vmatprep.subr.bf16.mxu0 0
    %605 = vmatpush1.bf16.msra.mxu0 %v581
    %606 = vmatprep.subr.bf16.mxu0 0
    %607 = vmatpush1.bf16.msra.mxu0 0
    %608 = vmatprep.subr.bf16.mxu0 0
    %609 = vmatpush1.bf16.msra.mxu0 0
    %610 = vmatprep.subr.bf16.mxu0 0
    %611 = vmatpush1.bf16.msra.mxu0 0
    %612 = vmatprep.subr.bf16.mxu0 0
    %613 = vmatpush1.bf16.msra.mxu0 0
    %614 = vmatprep.subr.bf16.mxu0 0
    %615 = vmatpush1.bf16.msra.mxu0 0
    %616 = vmatprep.subr.bf16.mxu0 0
    %617 = vmatpush1.bf16.msra.mxu0 0
    %618 = vmatprep.subr.bf16.mxu0 0
    %619 = vmatpush1.bf16.msra.mxu0 0
    %620 = vmatprep.subr.bf16.mxu0 0
    %621 = vmatpush1.bf16.msra.mxu0 0
    %622 = vmatprep.mubr.bf16.mxu0 0
    %623 = vmatmul.mubr.bf16.gmra.mrb[0].mxu0 %v519
    %v624 = vpop.f32.mrb[0].mxu0
    %v625 = vadd.f32 %v540, %v624
    %v626 = vpop.f32.mrb[0].mxu0
    %v627 = vpop.f32.mrb[0].mxu0
    %v628 = vpop.f32.mrb[0].mxu0
    %629 = vdwg.mxu0
    %v630 = vtanh.pop %v625
    %631 = vst [vmem:[%s5] sm:$0xff] %v630
    // Predicated region
    $region42: #{pinetwork_forward.1} parent=1 // pred_check
      _
    $region43: #{pinetwork_forward.1} parent=1 // pred_check_branch
      %633 = sbr.rel (0) target = $region45
    $region44: #{pinetwork_forward.1} parent=1 // pred_region
      _
    $region45: #{pinetwork_forward.1} parent=1 // pred_fallthru
      _
    // Predicated region
    $region46: #{pinetwork_forward.1} parent=1 // pred_check
      _
    $region47: #{pinetwork_forward.1} parent=1 // pred_check_branch
      %635 = sbr.rel (0) target = $region49
    $region48: #{pinetwork_forward.1} parent=1 // pred_region
      _
    $region49: #{pinetwork_forward.1} parent=1 // pred_fallthru
      _
    %636 = vsyncpa [#allocation3], 1
    %637 = vsyncpa [#allocation5], 1
    %638 = vsyncpa [#allocation8], 1

</llo_original>
